<compile_context>
chip_gen: v6e
topology: v6e:2x2x1
jax: 0.10.0
libtpu: 0.0.40
codegen_flags: <defaults>
</compile_context>

<pallas_src>
import functools
import math

import jax
import jax.numpy as jnp
from jax.experimental import pallas as pl
from jax.experimental.pallas import tpu as pltpu


# ---------------------------------------------------------------------------
# Kernel
# ---------------------------------------------------------------------------
def image_prefix_kernel(feat_ref, w_ref, b_ref, gamma_ref, beta_ref, out_ref,
                        *, use_layernorm: bool):
    """One lane-dense N tile of  LayerNorm_D(feat @ W + b)  (dropout = eval id).

    feat : (B, E)  bf16   (full block, reused every grid step)
    w    : (E, TN) bf16   (N-tiled weight slab; the dominant HBM stream)
    b    : (1, TN) f32
    gamma/beta : (1, D) f32
    out  : (B, TN) out_dtype (flat; 'b (s d) -> b s d' done in the wrapper)
    """
    B, TN = out_ref.shape
    D = gamma_ref.shape[-1]

    # nn.Linear: bf16 MXU inputs, f32 accumulation (W pre-transposed to (E, N)).
    proj = jnp.dot(feat_ref[...], w_ref[...], preferred_element_type=jnp.float32)
    proj = proj + b_ref[...]                       # (B, TN) f32

    # nn.Dropout: eval-mode identity.
    # TODO(synk): training-mode dropout would need pltpu.prng_seed/prng_random_bits.

    if use_layernorm:
        # TN % D == 0 by construction, so LayerNorm groups never straddle tiles.
        g = proj.reshape(B, TN // D, D)
        mu = jnp.mean(g, axis=-1, keepdims=True)
        var = jnp.mean(jnp.square(g - mu), axis=-1, keepdims=True)
        y = (g - mu) * jax.lax.rsqrt(var + 1e-5)   # PyTorch default eps
        y = y * gamma_ref[...] + beta_ref[...]     # (1, D) broadcast over (B, G, D)
        out_ref[...] = y.reshape(B, TN).astype(out_ref.dtype)   # flat, lane-dense
    else:
        out_ref[...] = proj.astype(out_ref.dtype)


# ---------------------------------------------------------------------------
# Generation-aware sizing
# ---------------------------------------------------------------------------
def _vmem_budget_bytes() -> int:
    """Usable VMEM budget: ~75% of 64 MiB on v7x, ~100 MiB on v5e/v6e (128 MiB)."""
    try:
        phys = int(pltpu.get_tpu_info().vmem_capacity_bytes)
    except Exception:
        phys = 128 * 1024 * 1024
    if phys <= 64 * 1024 * 1024:            # v7x-class: 64 MiB physical per TC
        return int(phys * 3 // 4)           # ~48 MiB
    return 100 * 1024 * 1024                # v5e/v6e


def _choose_tile_n(n_total: int, d: int, e: int, vmem_cap: int) -> int:
    """Largest TN (multiple of lcm(128, d), dividing n_total, leaving >=2 tiles)
    such that the double-buffered bf16 weight slab uses ~60% of the VMEM budget."""
    base = (128 * d) // math.gcd(128, d)    # lcm(128, d)
    if n_total % base != 0:
        raise ValueError(
            f"proj_out_dim={n_total} is not a multiple of lcm(128, out_dim)={base}; "
            "refusing to fall back to a single full-N weight block (would blow VMEM). "
            "Pass an explicit tile_n or pad the projection.")
    target = max(base, (int(vmem_cap * 0.6) // (2 * e * 2)) // base * base)
    tn = base
    while (tn * 2 <= target
           and n_total % (tn * 2) == 0
           and n_total // (tn * 2) >= 2):   # keep >=2 tiles (both v7x TCs get work)
        tn *= 2
    return tn


# ---------------------------------------------------------------------------
# Wrapper
# ---------------------------------------------------------------------------
def image_prefix_forward(feat, w_t, b, gamma, beta, out_seq_len, out_dim,
                         tile_n=None, use_layernorm=True, out_dtype=jnp.float32):
    """feat:(B,E), w_t:(E,S*D) **bf16**, b:(S*D,) -> (B, out_seq_len, out_dim)."""
    B, E = feat.shape
    N = out_seq_len * out_dim
    assert w_t.shape == (E, N), w_t.shape
    # The weight must already be stored in bf16 (cast once at parameter-load time).
    # Casting per call would ~3x the HBM traffic of this HBM-bound kernel.
    assert w_t.dtype == jnp.bfloat16, "pass the projection weight pre-cast to bf16"

    vmem_cap = _vmem_budget_bytes()
    if tile_n is None:
        tile_n = _choose_tile_n(N, out_dim, E, vmem_cap)
    if N % tile_n != 0 or tile_n % out_dim != 0 or tile_n % 128 != 0:
        raise ValueError(
            f"tile_n={tile_n} must divide N={N} and be a multiple of "
            f"out_dim={out_dim} and of 128")
    n_tiles = N // tile_n

    feat_bf = feat.astype(jnp.bfloat16)              # (B, E): negligible traffic
    b2 = b.reshape(1, N).astype(jnp.float32)
    gamma2 = gamma.reshape(1, out_dim).astype(jnp.float32)
    beta2 = beta.reshape(1, out_dim).astype(jnp.float32)

    out_bytes = jnp.dtype(out_dtype).itemsize
    # Advisory cost: matches the actually streamed bytes (bf16 weight/feat,
    # f32 bias/LN params counted once, chosen output dtype).
    cost = pl.CostEstimate(
        flops=2 * B * E * N,
        transcendentals=0,
        bytes_accessed=(E * N * 2 + B * E * 2 + N * 4 + 2 * out_dim * 4
                        + B * N * out_bytes),
    )

    # Weight multi-buffering: a 3rd buffer only when there are enough tiles to
    # use it and it still fits the generation-aware VMEM budget.
    w_slab = E * tile_n * 2                                  # one bf16 weight buffer
    fixed = (2 * B * E * 2                                   # feat (double-buffered)
             + 2 * tile_n * 4                                # bias tile
             + 4 * out_dim * 4                               # gamma/beta
             + 2 * B * tile_n * out_bytes)                   # output tile
    use_triple = (n_tiles >= 3) and (3 * w_slab + fixed <= vmem_cap)
    if use_triple:
        w_spec = pl.BlockSpec((E, tile_n), lambda j: (0, j),
                              pipeline_mode=pl.Buffered(3))
        w_bufs = 3
    else:
        w_spec = pl.BlockSpec((E, tile_n), lambda j: (0, j))
        w_bufs = 2

    vmem_need = w_bufs * w_slab + fixed
    vmem_limit = int(min(max(int(vmem_need * 1.5), 16 * 1024 * 1024), vmem_cap))

    kernel = functools.partial(image_prefix_kernel, use_layernorm=use_layernorm)

    out_flat = pl.pallas_call(
        kernel,
        out_shape=jax.ShapeDtypeStruct((B, N), out_dtype),
        grid_spec=pltpu.PrefetchScalarGridSpec(
            num_scalar_prefetch=0,
            grid=(n_tiles,),
            in_specs=[
                pl.BlockSpec((B, E), lambda j: (0, 0)),          # feat: full, reused
                w_spec,                                          # weight: N-tiled
                pl.BlockSpec((1, tile_n), lambda j: (0, j)),     # bias: N-tiled
                pl.BlockSpec((1, out_dim), lambda j: (0, 0)),    # gamma
                pl.BlockSpec((1, out_dim), lambda j: (0, 0)),    # beta
            ],
            out_specs=pl.BlockSpec((B, tile_n), lambda j: (0, j)),
        ),
        compiler_params=pltpu.CompilerParams(
            dimension_semantics=("parallel",),   # independent N tiles (2 TCs on v7x)
            vmem_limit_bytes=vmem_limit,
        ),
        cost_estimate=cost,
    )(feat_bf, w_t, b2, gamma2, beta2)

    # rearrange 'b (s d) -> b s d' in the wrapper (metadata-only), keeping the
    # kernel's store lane-dense.
    return out_flat.reshape(B, out_seq_len, out_dim)


# ---------------------------------------------------------------------------
# Glue + reference
# ---------------------------------------------------------------------------
def synthetic_encoder(x, w_enc, b_enc):
    # TODO(synk): stand-in for the pretrained CLIP/NFResNet encoder
    # (get_image_encoder); mean-pool + linear producing (B, encoder_out_dim).
    pooled = jnp.mean(x, axis=(2, 3))             # (B, C)
    return pooled @ w_enc + b_enc                 # (B, E)


def ref_forward(feat, w_t, b, gamma, beta, S, D):
    y = feat @ w_t + b.reshape(1, -1)
    y = y.reshape(feat.shape[0], S, D)
    mu = jnp.mean(y, axis=-1, keepdims=True)
    var = jnp.mean(jnp.square(y - mu), axis=-1, keepdims=True)
    return ((y - mu) * jax.lax.rsqrt(var + 1e-5)
            * gamma.reshape(1, 1, D) + beta.reshape(1, 1, D))


if __name__ == "__main__":
    # Small, self-consistent config:
    #   encoder_name='clip' (not in ENCODER_SEQ_LENS) -> encoder_out_dim=512,
    #   out_seq_len = config.image_seq_len, proj_out_dim = out_dim * out_seq_len,
    #   use_image_embed_layernorm = True, eval mode (dropout identity).
    B, C, H, W = 2, 4, 16, 16
    ENCODER_OUT_DIM = 512          # 'clip'
    OUT_DIM = 64                   # LM hidden (small for the demo)
    OUT_SEQ_LEN = 8                # config.image_seq_len  -> N = 512

    key = jax.random.PRNGKey(0)
    k_x, k_we, k_be, k_w, k_b = jax.random.split(key, 5)

    # Input image batch (NCHW, like the PyTorch module).
    x = jax.random.normal(k_x, (B, C, H, W), dtype=jnp.float32)

    # Deterministic synthetic encoder params (stand-in for the pretrained enc).
    w_enc = jax.random.normal(k_we, (C, ENCODER_OUT_DIM), dtype=jnp.float32) * 0.1
    b_enc = jax.random.normal(k_be, (ENCODER_OUT_DIM,), dtype=jnp.float32) * 0.01

    # nn.Linear(encoder_out_dim, out_dim * out_seq_len), stored pre-transposed (E, S*D).
    w_f32 = jax.random.normal(
        k_w, (ENCODER_OUT_DIM, OUT_DIM * OUT_SEQ_LEN), dtype=jnp.float32
    ) * (1.0 / jnp.sqrt(ENCODER_OUT_DIM))
    b = jax.random.normal(k_b, (OUT_DIM * OUT_SEQ_LEN,), dtype=jnp.float32) * 0.01

    # Cast the weight to bf16 ONCE, at "parameter-load" time (not per call).
    w_bf16 = w_f32.astype(jnp.bfloat16)

    # nn.LayerNorm(out_dim): gamma=1, beta=0.
    gamma = jnp.ones((OUT_DIM,), dtype=jnp.float32)
    beta = jnp.zeros((OUT_DIM,), dtype=jnp.float32)

    # "Encoder" (glue, plain JAX) -> (B, 512) features.
    feat = synthetic_encoder(x, w_enc, b_enc)

    # Pallas kernel: proj + (eval) dropout + layernorm; rearrange in the wrapper.
    out = image_prefix_forward(feat, w_bf16, b, gamma, beta,
                               OUT_SEQ_LEN, OUT_DIM, use_layernorm=True,
                               out_dtype=jnp.float32)
    out = jax.block_until_ready(out)
    assert out.shape == (B, OUT_SEQ_LEN, OUT_DIM), out.shape

    # Check 1 (tight): reference with the same bf16-quantized matmul operands
    # (kernel accumulates in f32), so only accumulation-order noise remains.
    feat_q = feat.astype(jnp.bfloat16).astype(jnp.float32)
    w_q = w_bf16.astype(jnp.float32)
    ref_q = ref_forward(feat_q, w_q, b, gamma, beta, OUT_SEQ_LEN, OUT_DIM)
    assert jnp.allclose(out, ref_q, atol=2e-2, rtol=2e-2), float(
        jnp.max(jnp.abs(out - ref_q)))

    # Check 2 (loose): against the true f32 PyTorch-equivalent reference,
    # bounding the bf16 weight-quantization error.
    ref_f32 = ref_forward(feat, w_f32, b, gamma, beta, OUT_SEQ_LEN, OUT_DIM)
    assert jnp.allclose(out, ref_f32, atol=6e-2, rtol=6e-2), float(
        jnp.max(jnp.abs(out - ref_f32)))

    # Check 3: bf16 output path (downstream LM consuming bf16 embeddings).
    out_bf = image_prefix_forward(feat, w_bf16, b, gamma, beta,
                                  OUT_SEQ_LEN, OUT_DIM, use_layernorm=True,
                                  out_dtype=jnp.bfloat16)
    out_bf = jax.block_until_ready(out_bf)
    assert out_bf.dtype == jnp.bfloat16
    assert jnp.allclose(out_bf.astype(jnp.float32), ref_q, atol=8e-2, rtol=8e-2), float(
        jnp.max(jnp.abs(out_bf.astype(jnp.float32) - ref_q)))

    print("KERNEL_OK")
</pallas_src>

<mosaic_0001>
module attributes {stable_mosaic.version = 11 : i64} {
  func.func @image_prefix_kernel(%arg0: i32, %arg1: memref<2x512xbf16, #tpu.memory_space<vmem>>, %arg2: memref<512x256xbf16, #tpu.memory_space<vmem>>, %arg3: memref<1x256xf32, #tpu.memory_space<vmem>>, %arg4: memref<1x64xf32, #tpu.memory_space<vmem>>, %arg5: memref<1x64xf32, #tpu.memory_space<vmem>>, %arg6: memref<2x256xf32, #tpu.memory_space<vmem>>) attributes {dimension_semantics = [#tpu.dimension_semantics<parallel>], iteration_bounds = array<i64: 2>, scalar_prefetch = 0 : i64, scratch_operands = 0 : i64, tpu.core_type = #tpu.core_type<tc>, window_params = [{pipeline_mode = #tpu.pipeline_mode<synchronous>, transform_indices = @transform_0, window_bounds = array<i64: 2, 512>}, {transform_indices = @transform_1, window_bounds = array<i64: 512, 256>}, {transform_indices = @transform_2, window_bounds = array<i64: 1, 256>}, {pipeline_mode = #tpu.pipeline_mode<synchronous>, transform_indices = @transform_3, window_bounds = array<i64: 1, 64>}, {pipeline_mode = #tpu.pipeline_mode<synchronous>, transform_indices = @transform_4, window_bounds = array<i64: 1, 64>}, {transform_indices = @transform_5, window_bounds = array<i64: 2, 256>}]} {
    %c0 = arith.constant 0 : index
    %c0_0 = arith.constant 0 : index
    %0 = vector.load %arg1[%c0, %c0_0] : memref<2x512xbf16, #tpu.memory_space<vmem>>, vector<2x512xbf16>
    %c0_1 = arith.constant 0 : index
    %c0_2 = arith.constant 0 : index
    %1 = vector.load %arg2[%c0_1, %c0_2] : memref<512x256xbf16, #tpu.memory_space<vmem>>, vector<512x256xbf16>
    %cst = arith.constant dense<0.000000e+00> : vector<2x256xf32>
    %2 = tpu.matmul %0, %1, %cst {dimension_numbers = #tpu.dot_dimension_numbers<[1], [0], [0], [1], [0, 0, 1, 1], [], []>} : vector<2x512xbf16>, vector<512x256xbf16>, vector<2x256xf32> -> vector<2x256xf32>
    %c0_3 = arith.constant 0 : index
    %c0_4 = arith.constant 0 : index
    %3 = vector.load %arg3[%c0_3, %c0_4] : memref<1x256xf32, #tpu.memory_space<vmem>>, vector<1x256xf32>
    %4 = vector.broadcast %3 : vector<1x256xf32> to vector<2x256xf32>
    %5 = arith.addf %2, %4 : vector<2x256xf32>
    %6 = vector.shape_cast %5 : vector<2x256xf32> to vector<2x4x64xf32>
    %cst_5 = arith.constant dense<0.000000e+00> : vector<2x4xf32>
    %7 = vector.multi_reduction <add>, %6, %cst_5 [2] : vector<2x4x64xf32> to vector<2x4xf32>
    %8 = vector.shape_cast %7 : vector<2x4xf32> to vector<2x4x1xf32>
    %cst_6 = arith.constant 6.400000e+01 : f32
    %9 = vector.broadcast %cst_6 : f32 to vector<2x4x1xf32>
    %10 = arith.divf %8, %9 : vector<2x4x1xf32>
    %11 = vector.broadcast %10 : vector<2x4x1xf32> to vector<2x4x64xf32>
    %12 = arith.subf %6, %11 : vector<2x4x64xf32>
    %13 = arith.mulf %12, %12 : vector<2x4x64xf32>
    %cst_7 = arith.constant dense<0.000000e+00> : vector<2x4xf32>
    %14 = vector.multi_reduction <add>, %13, %cst_7 [2] : vector<2x4x64xf32> to vector<2x4xf32>
    %15 = vector.shape_cast %14 : vector<2x4xf32> to vector<2x4x1xf32>
    %cst_8 = arith.constant 6.400000e+01 : f32
    %16 = vector.broadcast %cst_8 : f32 to vector<2x4x1xf32>
    %17 = arith.divf %15, %16 : vector<2x4x1xf32>
    %18 = vector.broadcast %10 : vector<2x4x1xf32> to vector<2x4x64xf32>
    %19 = arith.subf %6, %18 : vector<2x4x64xf32>
    %cst_9 = arith.constant 9.99999974E-6 : f32
    %20 = vector.broadcast %cst_9 : f32 to vector<2x4x1xf32>
    %21 = arith.addf %17, %20 : vector<2x4x1xf32>
    %22 = math.rsqrt %21 : vector<2x4x1xf32>
    %23 = vector.broadcast %22 : vector<2x4x1xf32> to vector<2x4x64xf32>
    %24 = arith.mulf %19, %23 : vector<2x4x64xf32>
    %c0_10 = arith.constant 0 : index
    %c0_11 = arith.constant 0 : index
    %25 = vector.load %arg4[%c0_10, %c0_11] : memref<1x64xf32, #tpu.memory_space<vmem>>, vector<1x64xf32>
    %26 = vector.shape_cast %25 : vector<1x64xf32> to vector<1x1x64xf32>
    %27 = vector.broadcast %26 : vector<1x1x64xf32> to vector<2x4x64xf32>
    %28 = arith.mulf %24, %27 : vector<2x4x64xf32>
    %c0_12 = arith.constant 0 : index
    %c0_13 = arith.constant 0 : index
    %29 = vector.load %arg5[%c0_12, %c0_13] : memref<1x64xf32, #tpu.memory_space<vmem>>, vector<1x64xf32>
    %30 = vector.shape_cast %29 : vector<1x64xf32> to vector<1x1x64xf32>
    %31 = vector.broadcast %30 : vector<1x1x64xf32> to vector<2x4x64xf32>
    %32 = arith.addf %28, %31 : vector<2x4x64xf32>
    %33 = vector.shape_cast %32 : vector<2x4x64xf32> to vector<2x256xf32>
    %c0_14 = arith.constant 0 : index
    %c0_15 = arith.constant 0 : index
    %34 = vector.load %arg6[%c0_14, %c0_15] : memref<2x256xf32, #tpu.memory_space<vmem>>, vector<2x256xf32>
    tpu.vector_store %arg6[%c0_14, %c0_15], %33 {strides = array<i32>} : memref<2x256xf32, #tpu.memory_space<vmem>>, vector<2x256xf32>,
    return
  }
  func.func @transform_0(%arg0: i32) -> (i32, i32) {
    %c0_i32 = arith.constant 0 : i32
    %c0_i32_0 = arith.constant 0 : i32
    %c0_i32_1 = arith.constant 0 : i32
    return %c0_i32, %c0_i32_0 : i32, i32
  }
  func.func @transform_1(%arg0: i32) -> (i32, i32) {
    %c0_i32 = arith.constant 0 : i32
    %c0_i32_0 = arith.constant 0 : i32
    return %c0_i32, %arg0 : i32, i32
  }
  func.func @transform_2(%arg0: i32) -> (i32, i32) {
    %c0_i32 = arith.constant 0 : i32
    %c0_i32_0 = arith.constant 0 : i32
    return %c0_i32, %arg0 : i32, i32
  }
  func.func @transform_3(%arg0: i32) -> (i32, i32) {
    %c0_i32 = arith.constant 0 : i32
    %c0_i32_0 = arith.constant 0 : i32
    %c0_i32_1 = arith.constant 0 : i32
    return %c0_i32, %c0_i32_0 : i32, i32
  }
  func.func @transform_4(%arg0: i32) -> (i32, i32) {
    %c0_i32 = arith.constant 0 : i32
    %c0_i32_0 = arith.constant 0 : i32
    %c0_i32_1 = arith.constant 0 : i32
    return %c0_i32, %c0_i32_0 : i32, i32
  }
  func.func @transform_5(%arg0: i32) -> (i32, i32) {
    %c0_i32 = arith.constant 0 : i32
    %c0_i32_0 = arith.constant 0 : i32
    return %c0_i32, %arg0 : i32, i32
  }
}

</mosaic_0001>

<llo_original>
// kernel: tpu_custom_call.1
$region0: #{tpu_custom_call.1}
  #allocation0 [shape = 'u32[]', space=smem, size = 0x4, offset = 0x4, fixed_abs, tag = 'smem constant byte address 0x4 - core index']
  #allocation1 [shape = 'u32[144,128]{1,0:T(1,128)}', space=vmem, size = 0x12000, scoped, tag = 'internal scratch']
  %s0 = inlined_call_operand.hbm [shape: bf16[2,512], index: 0, kind: input, shape index: {}]
  %s1 = inlined_call_operand.hbm [shape: bf16[512,512], index: 1, kind: input, shape index: {}]
  %s2 = inlined_call_operand.hbm [shape: f32[1,512], index: 2, kind: input, shape index: {}]
  %s3 = inlined_call_operand.vmem [shape: f32[1,64], index: 3, kind: input, shape index: {}]
  %s4 = inlined_call_operand.vmem [shape: f32[1,64], index: 4, kind: input, shape index: {}]
  %s5 = inlined_call_operand.hbm [shape: f32[2,512], index: 5, kind: output, shape index: {}]
  %s6 = sld [smem:[#allocation0]]
  $region65: #{tpu_custom_call.1} parent=0
    _
  %s8 = ssub.s32 1, %s6
  %s9 = scalar_select 0, %s8, %s6
  $region1: #{tpu_custom_call.1} parent=0
    #allocation2 [shape = 'u8[2048]{0}', space=vmem, size = 0x800, scoped, tag = 'input window, operand 0, single buffered']
    #allocation3 [shape = 's32[2]{0}', space=sflag, size = 0x8, scoped, tag = 'scoped memory for tpu_custom_call.1']
    #allocation4 [shape = 's32[2]{0}', space=sflag, size = 0x8, scoped, tag = 'scoped memory for tpu_custom_call.1']
    #allocation5 [shape = 'u8[524288]{0}', space=vmem, size = 0x80000, scoped, tag = 'input window, operand 1']
    #allocation6 [shape = 's32[2]{0}', space=sflag, size = 0x8, scoped, tag = 'scoped memory for tpu_custom_call.1']
    #allocation7 [shape = 'u8[2048]{0}', space=vmem, size = 0x800, scoped, tag = 'input window, operand 2']
    #allocation8 [shape = 'u8[4096]{0}', space=vmem, size = 0x1000, scoped, tag = 'output window, operand 0']
    %10 = vsyncpa [#allocation3], 0
    %11 = vsyncpa [#allocation6], 0
    %s12 = scalar_lea.sflag [#allocation6], 1
    %13 = vsyncpa %s12, 0
    %14 = vsyncpa [#allocation4], 0
    %s15 = scalar_lea.sflag [#allocation4], 1
    %16 = vsyncpa %s15, 0
    loop: start=0, step=1, limit=4
    $region2: #{tpu_custom_call.1} parent=1 // loop_pre_header
      _
    $region3: #{tpu_custom_call.1} parent=1 // loop_header
      %s18 = sphi 0, %s22
      %p19 = scmp.ge.s32.totalorder %s18, 4
      %s26 = sphi 0, %s26
      %s28 = sphi 0, %s26
      %s29 = sphi 0, %s28
      %s43 = sphi 0, %s29
      %s49 = sphi 0, %s51
      %s52 = sphi 0, %s49
      %s53 = sphi 0, %s52
      %s69 = sphi 0, %s53
      %s75 = sphi 0, %s77
      %s78 = sphi 0, %s75
      %s79 = sphi 0, %s78
      %s95 = sphi 0, %s79
      %s99 = sphi 0, %s99
      %s101 = sphi 0, %s99
      %s102 = sphi 0, %s101
      %s116 = sphi 0, %s102
      %s120 = sphi 0, %s120
      %s122 = sphi 0, %s120
      %s123 = sphi 0, %s122
      %s137 = sphi 0, %s123
      %s143 = sphi 0, %s145
      %s146 = sphi 0, %s143
      %s147 = sphi 0, %s146
      %s163 = sphi 0, %s147
    $region4: #{tpu_custom_call.1} parent=1 // loop_header_branch
      %21 = sbr.rel (%p19) target = $region8
    $region5: #{tpu_custom_call.1} parent=1 // loop_body
      %s23 = ssub.s32 %s18, 1
      %s24 = ssub.s32 %s18, 2
      %s25 = sadd.s32 %s18, 1
      %s27 = sadd.s32 %s26, 1
      %p30 = scmp.eq.s32.totalorder %s18, 1
      %p31 = scmp.ne.s32.totalorder %s26, %s28
      %p32 = scmp.eq.s32.totalorder %s18, 0
      %p33 = por %p31, %p32
      %p34 = scmp.ne.s32.totalorder %s26, %s28
      %p35 = scmp.eq.s32.totalorder %s23, 1
      %p36 = por %p34, %p35
      %p37 = scmp.ne.s32.totalorder %s28, %s29
      %p38 = scmp.eq.s32.totalorder %s23, 0
      %p39 = por %p37, %p38
      %p40 = scmp.ne.s32.totalorder %s28, %s29
      %p41 = scmp.eq.s32.totalorder %s24, 1
      %p42 = por %p40, %p41
      %p44 = scmp.ne.s32.totalorder %s29, %s43
      %p45 = scmp.eq.s32.totalorder %s24, 0
      %p46 = por %p44, %p45
      %s47 = ssub.s32 %s18, %s25
      %p48 = scmp.eq.s32.totalorder %s47, 0
      %s50 = sadd.s32 %s49, 1
      %s51 = scalar_select %p48, %s49, %s50
      %p54 = pneg %p48
      %p55 = scmp.eq.s32.totalorder %s18, 1
      %p56 = por %p54, %p55
      %p57 = scmp.ne.s32.totalorder %s49, %s52
      %p58 = scmp.eq.s32.totalorder %s18, 0
      %p59 = por %p57, %p58
      %p60 = scmp.ne.s32.totalorder %s49, %s52
      %p61 = scmp.eq.s32.totalorder %s23, 1
      %p62 = por %p60, %p61
      %p63 = scmp.ne.s32.totalorder %s52, %s53
      %p64 = scmp.eq.s32.totalorder %s23, 0
      %p65 = por %p63, %p64
      %p66 = scmp.ne.s32.totalorder %s52, %s53
      %p67 = scmp.eq.s32.totalorder %s24, 1
      %p68 = por %p66, %p67
      %p70 = scmp.ne.s32.totalorder %s53, %s69
      %p71 = scmp.eq.s32.totalorder %s24, 0
      %p72 = por %p70, %p71
      %s73 = ssub.s32 %s18, %s25
      %p74 = scmp.eq.s32.totalorder %s73, 0
      %s76 = sadd.s32 %s75, 1
      %s77 = scalar_select %p74, %s75, %s76
      %p80 = pneg %p74
      %p81 = scmp.eq.s32.totalorder %s18, 1
      %p82 = por %p80, %p81
      %p83 = scmp.ne.s32.totalorder %s75, %s78
      %p84 = scmp.eq.s32.totalorder %s18, 0
      %p85 = por %p83, %p84
      %p86 = scmp.ne.s32.totalorder %s75, %s78
      %p87 = scmp.eq.s32.totalorder %s23, 1
      %p88 = por %p86, %p87
      %p89 = scmp.ne.s32.totalorder %s78, %s79
      %p90 = scmp.eq.s32.totalorder %s23, 0
      %p91 = por %p89, %p90
      %p92 = scmp.ne.s32.totalorder %s78, %s79
      %p93 = scmp.eq.s32.totalorder %s24, 1
      %p94 = por %p92, %p93
      %p96 = scmp.ne.s32.totalorder %s79, %s95
      %p97 = scmp.eq.s32.totalorder %s24, 0
      %p98 = por %p96, %p97
      %s100 = sadd.s32 %s99, 1
      %p103 = scmp.eq.s32.totalorder %s18, 1
      %p104 = scmp.ne.s32.totalorder %s99, %s101
      %p105 = scmp.eq.s32.totalorder %s18, 0
      %p106 = por %p104, %p105
      %p107 = scmp.ne.s32.totalorder %s99, %s101
      %p108 = scmp.eq.s32.totalorder %s23, 1
      %p109 = por %p107, %p108
      %p110 = scmp.ne.s32.totalorder %s101, %s102
      %p111 = scmp.eq.s32.totalorder %s23, 0
      %p112 = por %p110, %p111
      %p113 = scmp.ne.s32.totalorder %s101, %s102
      %p114 = scmp.eq.s32.totalorder %s24, 1
      %p115 = por %p113, %p114
      %p117 = scmp.ne.s32.totalorder %s102, %s116
      %p118 = scmp.eq.s32.totalorder %s24, 0
      %p119 = por %p117, %p118
      %s121 = sadd.s32 %s120, 1
      %p124 = scmp.eq.s32.totalorder %s18, 1
      %p125 = scmp.ne.s32.totalorder %s120, %s122
      %p126 = scmp.eq.s32.totalorder %s18, 0
      %p127 = por %p125, %p126
      %p128 = scmp.ne.s32.totalorder %s120, %s122
      %p129 = scmp.eq.s32.totalorder %s23, 1
      %p130 = por %p128, %p129
      %p131 = scmp.ne.s32.totalorder %s122, %s123
      %p132 = scmp.eq.s32.totalorder %s23, 0
      %p133 = por %p131, %p132
      %p134 = scmp.ne.s32.totalorder %s122, %s123
      %p135 = scmp.eq.s32.totalorder %s24, 1
      %p136 = por %p134, %p135
      %p138 = scmp.ne.s32.totalorder %s123, %s137
      %p139 = scmp.eq.s32.totalorder %s24, 0
      %p140 = por %p138, %p139
      %s141 = ssub.s32 %s18, %s25
      %p142 = scmp.eq.s32.totalorder %s141, 0
      %s144 = sadd.s32 %s143, 1
      %s145 = scalar_select %p142, %s143, %s144
      %p148 = pneg %p142
      %p149 = scmp.eq.s32.totalorder %s18, 1
      %p150 = por %p148, %p149
      %p151 = scmp.ne.s32.totalorder %s143, %s146
      %p152 = scmp.eq.s32.totalorder %s18, 0
      %p153 = por %p151, %p152
      %p154 = scmp.ne.s32.totalorder %s143, %s146
      %p155 = scmp.eq.s32.totalorder %s23, 1
      %p156 = por %p154, %p155
      %p157 = scmp.ne.s32.totalorder %s146, %s147
      %p158 = scmp.eq.s32.totalorder %s23, 0
      %p159 = por %p157, %p158
      %p160 = scmp.ne.s32.totalorder %s146, %s147
      %p161 = scmp.eq.s32.totalorder %s24, 1
      %p162 = por %p160, %p161
      %p164 = scmp.ne.s32.totalorder %s147, %s163
      %p165 = scmp.eq.s32.totalorder %s24, 0
      %p166 = por %p164, %p165
      %p167 = scmp.le.s32.totalorder 1, %s18
      %p168 = scmp.lt.s32.totalorder %s18, 3
      %p169 = pnand %p167, %p168
      %p170 = pneg %p169
      // Predicated region
      $region9: #{tpu_custom_call.1} parent=5 // pred_check
        _
      $region10: #{tpu_custom_call.1} parent=5 // pred_check_branch
        %172 = sbr.rel (%p169) target = $region12
      $region11: #{tpu_custom_call.1} parent=5 // pred_region
        %s173 = ssub.s32 %s18, 1
        // Predicated region
        $region13: #{tpu_custom_call.1} parent=11 // pred_check
          %p174 = pneg %p39
        $region14: #{tpu_custom_call.1} parent=11 // pred_check_branch
          %176 = sbr.rel (%p174) target = $region16
        $region15: #{tpu_custom_call.1} parent=11 // pred_region
          %s178 = ssub.s32 64, 64
          %179 = vsyncadd [#allocation3], %s178
          %s181 = sshll.u32 [#allocation2], 4
          %s182 = int_to_ptr.vmem [resolvable:$true] %s181
          %184 = dma.hbm_to_vmem [thread:$0]  %s0, 64, %s182, [#allocation3]
        $region16: #{tpu_custom_call.1} parent=11 // pred_fallthru
          _
        // Predicated region
        $region17: #{tpu_custom_call.1} parent=11 // pred_check
          %p185 = pneg %p112
        $region18: #{tpu_custom_call.1} parent=11 // pred_check_branch
          %187 = sbr.rel (%p185) target = $region20
        $region19: #{tpu_custom_call.1} parent=11 // pred_region
          _
        $region20: #{tpu_custom_call.1} parent=11 // pred_fallthru
          _
        // Predicated region
        $region21: #{tpu_custom_call.1} parent=11 // pred_check
          %p188 = pneg %p133
        $region22: #{tpu_custom_call.1} parent=11 // pred_check_branch
          %190 = sbr.rel (%p188) target = $region24
        $region23: #{tpu_custom_call.1} parent=11 // pred_region
          _
        $region24: #{tpu_custom_call.1} parent=11 // pred_fallthru
          _
      $region12: #{tpu_custom_call.1} parent=5 // pred_fallthru
        _
      %p191 = scmp.lt.s32.totalorder %s18, 2
      // Predicated region
      $region25: #{tpu_custom_call.1} parent=5 // pred_check
        %p192 = pneg %p191
      $region26: #{tpu_custom_call.1} parent=5 // pred_check_branch
        %194 = sbr.rel (%p192) target = $region28
      $region27: #{tpu_custom_call.1} parent=5 // pred_region
        // Predicated region
        $region29: #{tpu_custom_call.1} parent=27 // pred_check
          %p195 = pneg %p59
        $region30: #{tpu_custom_call.1} parent=27 // pred_check_branch
          %197 = sbr.rel (%p195) target = $region32
        $region31: #{tpu_custom_call.1} parent=27 // pred_region
          %s198 = sand.u32 %s18, 1
          %s199 = scalar_lea.sflag [#allocation6], %s198
          %s200 = sand.u32 %s49, 1
          %s201 = smul.addr %s200, 512
          %s202 = scalar_lea.vmem [#allocation5], %s201
          %s203 = smul.u32 2, %s18
          %s205 = ssub.s32 8192, 8192
          %206 = vsyncadd %s199, %s205
          %s207 = smul.addr %s203, 64
          %s208 = scalar_lea.hbm %s1, %s207
          %s209 = sshll.u32 %s202, 4
          %s210 = int_to_ptr.vmem [resolvable:$true] %s209
          %215 = dma.hbm_to_vmem [thread:$0]  %s208, 8192, %s210, %s199, 256, 128, 8
        $region32: #{tpu_custom_call.1} parent=27 // pred_fallthru
          _
        // Predicated region
        $region33: #{tpu_custom_call.1} parent=27 // pred_check
          %p216 = pneg %p85
        $region34: #{tpu_custom_call.1} parent=27 // pred_check_branch
          %218 = sbr.rel (%p216) target = $region36
        $region35: #{tpu_custom_call.1} parent=27 // pred_region
          %s219 = sand.u32 %s18, 1
          %s220 = scalar_lea.sflag [#allocation6], %s219
          %s221 = sand.u32 %s75, 1
          %s222 = smul.addr %s221, 2
          %s223 = scalar_lea.vmem [#allocation7], %s222
          %s224 = smul.u32 2, %s18
          %s226 = ssub.s32 32, 32
          %227 = vsyncadd %s220, %s226
          %s228 = smul.addr %s224, 16
          %s229 = scalar_lea.hbm %s2, %s228
          %s231 = sshll.u32 %s223, 4
          %s232 = int_to_ptr.vmem [resolvable:$true] %s231
          %234 = dma.hbm_to_vmem [thread:$0]  %s229, 32, %s232, %s220
        $region36: #{tpu_custom_call.1} parent=27 // pred_fallthru
          _
      $region28: #{tpu_custom_call.1} parent=5 // pred_fallthru
        _
      %p235 = scmp.le.s32.totalorder 1, %s18
      %p236 = scmp.lt.s32.totalorder %s18, 3
      %p237 = pnand %p235, %p236
      %p238 = pneg %p237
      // Predicated region
      $region37: #{tpu_custom_call.1} parent=5 // pred_check
        _
      $region38: #{tpu_custom_call.1} parent=5 // pred_check_branch
        %240 = sbr.rel (%p237) target = $region40
      $region39: #{tpu_custom_call.1} parent=5 // pred_region
        %s241 = ssub.s32 %s18, 1
        // Predicated region
        $region41: #{tpu_custom_call.1} parent=39 // pred_check
          %p242 = pneg %p39
        $region42: #{tpu_custom_call.1} parent=39 // pred_check_branch
          %244 = sbr.rel (%p242) target = $region44
        $region43: #{tpu_custom_call.1} parent=39 // pred_region
          %245 = dma.done [#allocation3], 64
        $region44: #{tpu_custom_call.1} parent=39 // pred_fallthru
          _
        %s246 = sand.u32 %s23, 1
        %s247 = scalar_lea.sflag [#allocation6], %s246
        %s248 = sand.u32 %s52, 1
        %s249 = smul.addr %s248, 512
        %s250 = scalar_lea.vmem [#allocation5], %s249
        // Predicated region
        $region45: #{tpu_custom_call.1} parent=39 // pred_check
          %p251 = pneg %p65
        $region46: #{tpu_custom_call.1} parent=39 // pred_check_branch
          %253 = sbr.rel (%p251) target = $region48
        $region47: #{tpu_custom_call.1} parent=39 // pred_region
          %254 = dma.done %s247, 8192
        $region48: #{tpu_custom_call.1} parent=39 // pred_fallthru
          _
        %s255 = sand.u32 %s23, 1
        %s256 = scalar_lea.sflag [#allocation6], %s255
        %s257 = sand.u32 %s78, 1
        %s258 = smul.addr %s257, 2
        %s259 = scalar_lea.vmem [#allocation7], %s258
        // Predicated region
        $region49: #{tpu_custom_call.1} parent=39 // pred_check
          %p260 = pneg %p91
        $region50: #{tpu_custom_call.1} parent=39 // pred_check_branch
          %262 = sbr.rel (%p260) target = $region52
        $region51: #{tpu_custom_call.1} parent=39 // pred_region
          %263 = dma.done %s256, 32
        $region52: #{tpu_custom_call.1} parent=39 // pred_fallthru
          _
        %p264 = pneg %p39
        %p265 = pneg %p36
        %s266 = sand.u32 %s23, 1
        %s267 = scalar_lea.sflag [#allocation6], %s266
        %s268 = sand.u32 %s52, 1
        %s269 = smul.addr %s268, 512
        %s270 = scalar_lea.vmem [#allocation5], %s269
        %p271 = pneg %p65
        %p272 = pneg %p62
        %s273 = sand.u32 %s23, 1
        %s274 = scalar_lea.sflag [#allocation6], %s273
        %s275 = sand.u32 %s78, 1
        %s276 = smul.addr %s275, 2
        %s277 = scalar_lea.vmem [#allocation7], %s276
        %p278 = pneg %p91
        %p279 = pneg %p88
        %p280 = pneg %p112
        %p281 = pneg %p109
        %p282 = pneg %p133
        %p283 = pneg %p130
        %p284 = pneg %p159
        %p285 = pneg %p156
        %s286 = sand.u32 %s146, 1
        %s287 = scalar_lea.sflag [#allocation4], %s286
        %s288 = sand.u32 %s146, 1
        %s289 = smul.addr %s288, 4
        %s290 = scalar_lea.vmem [#allocation8], %s289
        %s291 = smul.u32 2, %s23
        %s292 = smul.u32 2, %s23
        %s293 = smul.u32 2, %s23
        %v294 = vld [vmem:[#allocation2] sm:$0xf]
        %v295 = vld [vmem:[%s250] sm:$0xff]
        %v296 = vld [vmem:[%s250 + $0x8] sm:$0xff]
        %v297 = vld [vmem:[%s250 + $0x10] sm:$0xff]
        %v298 = vld [vmem:[%s250 + $0x18] sm:$0xff]
        %v299 = vld [vmem:[%s250 + $0x20] sm:$0xff]
        %v300 = vld [vmem:[%s250 + $0x28] sm:$0xff]
        %v301 = vld [vmem:[%s250 + $0x30] sm:$0xff]
        %v302 = vld [vmem:[%s250 + $0x38] sm:$0xff]
        %v303 = vld [vmem:[%s250 + $0x40] sm:$0xff]
        %v304 = vld [vmem:[%s250 + $0x48] sm:$0xff]
        %v305 = vld [vmem:[%s250 + $0x50] sm:$0xff]
        %v306 = vld [vmem:[%s250 + $0x58] sm:$0xff]
        %v307 = vld [vmem:[%s250 + $0x60] sm:$0xff]
        %v308 = vld [vmem:[%s250 + $0x68] sm:$0xff]
        %v309 = vld [vmem:[%s250 + $0x70] sm:$0xff]
        %v310 = vld [vmem:[%s250 + $0x78] sm:$0xff]
        %v311 = vld [vmem:[%s250 + $0x80] sm:$0xff]
        %v312 = vld [vmem:[%s250 + $0x88] sm:$0xff]
        %v313 = vld [vmem:[%s250 + $0x90] sm:$0xff]
        %v314 = vld [vmem:[%s250 + $0x98] sm:$0xff]
        %v315 = vld [vmem:[%s250 + $0xa0] sm:$0xff]
        %v316 = vld [vmem:[%s250 + $0xa8] sm:$0xff]
        %v317 = vld [vmem:[%s250 + $0xb0] sm:$0xff]
        %v318 = vld [vmem:[%s250 + $0xb8] sm:$0xff]
        %v319 = vld [vmem:[%s250 + $0xc0] sm:$0xff]
        %v320 = vld [vmem:[%s250 + $0xc8] sm:$0xff]
        %v321 = vld [vmem:[%s250 + $0xd0] sm:$0xff]
        %v322 = vld [vmem:[%s250 + $0xd8] sm:$0xff]
        %v323 = vld [vmem:[%s250 + $0xe0] sm:$0xff]
        %v324 = vld [vmem:[%s250 + $0xe8] sm:$0xff]
        %v325 = vld [vmem:[%s250 + $0xf0] sm:$0xff]
        %v326 = vld [vmem:[%s250 + $0xf8] sm:$0xff]
        %v327 = vld [vmem:[%s250 + $0x100] sm:$0xff]
        %v328 = vld [vmem:[%s250 + $0x108] sm:$0xff]
        %v329 = vld [vmem:[%s250 + $0x110] sm:$0xff]
        %v330 = vld [vmem:[%s250 + $0x118] sm:$0xff]
        %v331 = vld [vmem:[%s250 + $0x120] sm:$0xff]
        %v332 = vld [vmem:[%s250 + $0x128] sm:$0xff]
        %v333 = vld [vmem:[%s250 + $0x130] sm:$0xff]
        %v334 = vld [vmem:[%s250 + $0x138] sm:$0xff]
        %v335 = vld [vmem:[%s250 + $0x140] sm:$0xff]
        %v336 = vld [vmem:[%s250 + $0x148] sm:$0xff]
        %v337 = vld [vmem:[%s250 + $0x150] sm:$0xff]
        %v338 = vld [vmem:[%s250 + $0x158] sm:$0xff]
        %v339 = vld [vmem:[%s250 + $0x160] sm:$0xff]
        %v340 = vld [vmem:[%s250 + $0x168] sm:$0xff]
        %v341 = vld [vmem:[%s250 + $0x170] sm:$0xff]
        %v342 = vld [vmem:[%s250 + $0x178] sm:$0xff]
        %v343 = vld [vmem:[%s250 + $0x180] sm:$0xff]
        %v344 = vld [vmem:[%s250 + $0x188] sm:$0xff]
        %v345 = vld [vmem:[%s250 + $0x190] sm:$0xff]
        %v346 = vld [vmem:[%s250 + $0x198] sm:$0xff]
        %v347 = vld [vmem:[%s250 + $0x1a0] sm:$0xff]
        %v348 = vld [vmem:[%s250 + $0x1a8] sm:$0xff]
        %v349 = vld [vmem:[%s250 + $0x1b0] sm:$0xff]
        %v350 = vld [vmem:[%s250 + $0x1b8] sm:$0xff]
        %v351 = vld [vmem:[%s250 + $0x1c0] sm:$0xff]
        %v352 = vld [vmem:[%s250 + $0x1c8] sm:$0xff]
        %v353 = vld [vmem:[%s250 + $0x1d0] sm:$0xff]
        %v354 = vld [vmem:[%s250 + $0x1d8] sm:$0xff]
        %v355 = vld [vmem:[%s250 + $0x1e0] sm:$0xff]
        %v356 = vld [vmem:[%s250 + $0x1e8] sm:$0xff]
        %v357 = vld [vmem:[%s250 + $0x1f0] sm:$0xff]
        %v358 = vld [vmem:[%s250 + $0x1f8] sm:$0xff]
        %v359 = vld [vmem:[%s259] sm:$0x3]
        %v361 = vlaneseq
        %v362 = vshrl.u32 %v361, 7
        %v363 = vsub.s32 0, %v362
        %v364 = vrot.slane %v359, %v363
        %v365 = vlaneseq
        %v366 = vshrl.u32 %v365, 7
        %v367 = vsub.s32 1, %v366
        %v368 = vrot.slane %v359, %v367
        %v373 = vunpack.c.l.s4 1966171168
        %v374 = vunpack.c.0.s8 %v373
        %v375 = vlaneseq
        %v376 = vshrl.u32 %v375, 7
        %v377 = vsub.s32 %v374, %v376
        %v378 = vrot.slane %v294, %v377
        %v379 = vcombine.high %v378, %v378
        %v381 = vunpack.c.l.s4 1966171168
        %v382 = vunpack.c.0.s8 %v381
        %v383 = vlaneseq
        %v384 = vshrl.u32 %v383, 7
        %v385 = vsub.s32 %v382, %v384
        %v386 = vrot.slane %v378, %v385
        %v388 = vunpack.c.l.s4 1966171168
        %v389 = vunpack.c.0.s8 %v388
        %v390 = vlaneseq
        %v391 = vshrl.u32 %v390, 7
        %v392 = vsub.s32 %v389, %v391
        %v393 = vrot.slane %v379, %v392
        %v394 = vcombine.high %v386, %v386
        %v395 = vcombine.high %v393, %v393
        %v464 = vunpack.c.l.b16 %v295
        %v465 = vunpack.c.h.b16 %v295
        %v466 = vunpack.c.l.b16 %v296
        %v467 = vunpack.c.h.b16 %v296
        %v468 = vunpack.c.l.b16 %v297
        %v469 = vunpack.c.h.b16 %v297
        %v470 = vunpack.c.l.b16 %v298
        %v471 = vunpack.c.h.b16 %v298
        %v472 = vunpack.c.l.b16 %v299
        %v473 = vunpack.c.h.b16 %v299
        %v474 = vunpack.c.l.b16 %v300
        %v475 = vunpack.c.h.b16 %v300
        %v476 = vunpack.c.l.b16 %v301
        %v477 = vunpack.c.h.b16 %v301
        %v478 = vunpack.c.l.b16 %v302
        %v479 = vunpack.c.h.b16 %v302
        %v480 = vunpack.c.l.b16 %v303
        %v481 = vunpack.c.h.b16 %v303
        %v482 = vunpack.c.l.b16 %v304
        %v483 = vunpack.c.h.b16 %v304
        %v484 = vunpack.c.l.b16 %v305
        %v485 = vunpack.c.h.b16 %v305
        %v486 = vunpack.c.l.b16 %v306
        %v487 = vunpack.c.h.b16 %v306
        %v488 = vunpack.c.l.b16 %v307
        %v489 = vunpack.c.h.b16 %v307
        %v490 = vunpack.c.l.b16 %v308
        %v491 = vunpack.c.h.b16 %v308
        %v492 = vunpack.c.l.b16 %v309
        %v493 = vunpack.c.h.b16 %v309
        %v494 = vunpack.c.l.b16 %v310
        %v495 = vunpack.c.h.b16 %v310
        %v496 = vunpack.c.l.b16 %v311
        %v497 = vunpack.c.h.b16 %v311
        %v498 = vunpack.c.l.b16 %v312
        %v499 = vunpack.c.h.b16 %v312
        %v500 = vunpack.c.l.b16 %v313
        %v501 = vunpack.c.h.b16 %v313
        %v502 = vunpack.c.l.b16 %v314
        %v503 = vunpack.c.h.b16 %v314
        %v504 = vunpack.c.l.b16 %v315
        %v505 = vunpack.c.h.b16 %v315
        %v506 = vunpack.c.l.b16 %v316
        %v507 = vunpack.c.h.b16 %v316
        %v508 = vunpack.c.l.b16 %v317
        %v509 = vunpack.c.h.b16 %v317
        %v510 = vunpack.c.l.b16 %v318
        %v511 = vunpack.c.h.b16 %v318
        %v512 = vunpack.c.l.b16 %v319
        %v513 = vunpack.c.h.b16 %v319
        %v514 = vunpack.c.l.b16 %v320
        %v515 = vunpack.c.h.b16 %v320
        %v516 = vunpack.c.l.b16 %v321
        %v517 = vunpack.c.h.b16 %v321
        %v518 = vunpack.c.l.b16 %v322
        %v519 = vunpack.c.h.b16 %v322
        %v520 = vunpack.c.l.b16 %v323
        %v521 = vunpack.c.h.b16 %v323
        %v522 = vunpack.c.l.b16 %v324
        %v523 = vunpack.c.h.b16 %v324
        %v524 = vunpack.c.l.b16 %v325
        %v525 = vunpack.c.h.b16 %v325
        %v526 = vunpack.c.l.b16 %v326
        %v527 = vunpack.c.h.b16 %v326
        %v528 = vunpack.c.l.b16 %v327
        %v529 = vunpack.c.h.b16 %v327
        %v530 = vunpack.c.l.b16 %v328
        %v531 = vunpack.c.h.b16 %v328
        %v532 = vunpack.c.l.b16 %v329
        %v533 = vunpack.c.h.b16 %v329
        %v534 = vunpack.c.l.b16 %v330
        %v535 = vunpack.c.h.b16 %v330
        %v536 = vunpack.c.l.b16 %v331
        %v537 = vunpack.c.h.b16 %v331
        %v538 = vunpack.c.l.b16 %v332
        %v539 = vunpack.c.h.b16 %v332
        %v540 = vunpack.c.l.b16 %v333
        %v541 = vunpack.c.h.b16 %v333
        %v542 = vunpack.c.l.b16 %v334
        %v543 = vunpack.c.h.b16 %v334
        %v544 = vunpack.c.l.b16 %v335
        %v545 = vunpack.c.h.b16 %v335
        %v546 = vunpack.c.l.b16 %v336
        %v547 = vunpack.c.h.b16 %v336
        %v548 = vunpack.c.l.b16 %v337
        %v549 = vunpack.c.h.b16 %v337
        %v550 = vunpack.c.l.b16 %v338
        %v551 = vunpack.c.h.b16 %v338
        %v552 = vunpack.c.l.b16 %v339
        %v553 = vunpack.c.h.b16 %v339
        %v554 = vunpack.c.l.b16 %v340
        %v555 = vunpack.c.h.b16 %v340
        %v556 = vunpack.c.l.b16 %v341
        %v557 = vunpack.c.h.b16 %v341
        %v558 = vunpack.c.l.b16 %v342
        %v559 = vunpack.c.h.b16 %v342
        %v560 = vunpack.c.l.b16 %v343
        %v561 = vunpack.c.h.b16 %v343
        %v562 = vunpack.c.l.b16 %v344
        %v563 = vunpack.c.h.b16 %v344
        %v564 = vunpack.c.l.b16 %v345
        %v565 = vunpack.c.h.b16 %v345
        %v566 = vunpack.c.l.b16 %v346
        %v567 = vunpack.c.h.b16 %v346
        %v568 = vunpack.c.l.b16 %v347
        %v569 = vunpack.c.h.b16 %v347
        %v570 = vunpack.c.l.b16 %v348
        %v571 = vunpack.c.h.b16 %v348
        %v572 = vunpack.c.l.b16 %v349
        %v573 = vunpack.c.h.b16 %v349
        %v574 = vunpack.c.l.b16 %v350
        %v575 = vunpack.c.h.b16 %v350
        %v576 = vunpack.c.l.b16 %v351
        %v577 = vunpack.c.h.b16 %v351
        %v578 = vunpack.c.l.b16 %v352
        %v579 = vunpack.c.h.b16 %v352
        %v580 = vunpack.c.l.b16 %v353
        %v581 = vunpack.c.h.b16 %v353
        %v582 = vunpack.c.l.b16 %v354
        %v583 = vunpack.c.h.b16 %v354
        %v584 = vunpack.c.l.b16 %v355
        %v585 = vunpack.c.h.b16 %v355
        %v586 = vunpack.c.l.b16 %v356
        %v587 = vunpack.c.h.b16 %v356
        %v588 = vunpack.c.l.b16 %v357
        %v589 = vunpack.c.h.b16 %v357
        %v590 = vunpack.c.l.b16 %v358
        %v591 = vunpack.c.h.b16 %v358
        %v592 = vpack.c.b16 %v466, %v464
        %v593 = vpack.c.b16 %v467, %v465
        %v594 = vpack.c.b16 %v470, %v468
        %v595 = vpack.c.b16 %v471, %v469
        %v596 = vpack.c.b16 %v474, %v472
        %v597 = vpack.c.b16 %v475, %v473
        %v598 = vpack.c.b16 %v478, %v476
        %v599 = vpack.c.b16 %v479, %v477
        %v600 = vpack.c.b16 %v482, %v480
        %v601 = vpack.c.b16 %v483, %v481
        %v602 = vpack.c.b16 %v486, %v484
        %v603 = vpack.c.b16 %v487, %v485
        %v604 = vpack.c.b16 %v490, %v488
        %v605 = vpack.c.b16 %v491, %v489
        %v606 = vpack.c.b16 %v494, %v492
        %v607 = vpack.c.b16 %v495, %v493
        %v608 = vpack.c.b16 %v498, %v496
        %v609 = vpack.c.b16 %v499, %v497
        %v610 = vpack.c.b16 %v502, %v500
        %v611 = vpack.c.b16 %v503, %v501
        %v612 = vpack.c.b16 %v506, %v504
        %v613 = vpack.c.b16 %v507, %v505
        %v614 = vpack.c.b16 %v510, %v508
        %v615 = vpack.c.b16 %v511, %v509
        %v616 = vpack.c.b16 %v514, %v512
        %v617 = vpack.c.b16 %v515, %v513
        %v618 = vpack.c.b16 %v518, %v516
        %v619 = vpack.c.b16 %v519, %v517
        %v620 = vpack.c.b16 %v522, %v520
        %v621 = vpack.c.b16 %v523, %v521
        %v622 = vpack.c.b16 %v526, %v524
        %v623 = vpack.c.b16 %v527, %v525
        %v624 = vpack.c.b16 %v530, %v528
        %v625 = vpack.c.b16 %v531, %v529
        %v626 = vpack.c.b16 %v534, %v532
        %v627 = vpack.c.b16 %v535, %v533
        %v628 = vpack.c.b16 %v538, %v536
        %v629 = vpack.c.b16 %v539, %v537
        %v630 = vpack.c.b16 %v542, %v540
        %v631 = vpack.c.b16 %v543, %v541
        %v632 = vpack.c.b16 %v546, %v544
        %v633 = vpack.c.b16 %v547, %v545
        %v634 = vpack.c.b16 %v550, %v548
        %v635 = vpack.c.b16 %v551, %v549
        %v636 = vpack.c.b16 %v554, %v552
        %v637 = vpack.c.b16 %v555, %v553
        %v638 = vpack.c.b16 %v558, %v556
        %v639 = vpack.c.b16 %v559, %v557
        %v640 = vpack.c.b16 %v562, %v560
        %v641 = vpack.c.b16 %v563, %v561
        %v642 = vpack.c.b16 %v566, %v564
        %v643 = vpack.c.b16 %v567, %v565
        %v644 = vpack.c.b16 %v570, %v568
        %v645 = vpack.c.b16 %v571, %v569
        %v646 = vpack.c.b16 %v574, %v572
        %v647 = vpack.c.b16 %v575, %v573
        %v648 = vpack.c.b16 %v578, %v576
        %v649 = vpack.c.b16 %v579, %v577
        %v650 = vpack.c.b16 %v582, %v580
        %v651 = vpack.c.b16 %v583, %v581
        %v652 = vpack.c.b16 %v586, %v584
        %v653 = vpack.c.b16 %v587, %v585
        %v654 = vpack.c.b16 %v590, %v588
        %v655 = vpack.c.b16 %v591, %v589
        %720 = vmatprep.subr.bf16.mxu0 %v607
        %721 = vmatpush1.bf16.msra.mxu0 %v606
        %722 = vmatprep.subr.bf16.mxu0 %v605
        %723 = vmatpush1.bf16.msra.mxu0 %v604
        %724 = vmatprep.subr.bf16.mxu0 %v603
        %725 = vmatpush1.bf16.msra.mxu0 %v602
        %726 = vmatprep.subr.bf16.mxu0 %v601
        %727 = vmatpush1.bf16.msra.mxu0 %v600
        %728 = vmatprep.subr.bf16.mxu0 %v599
        %729 = vmatpush1.bf16.msra.mxu0 %v598
        %730 = vmatprep.subr.bf16.mxu0 %v597
        %731 = vmatpush1.bf16.msra.mxu0 %v596
        %732 = vmatprep.subr.bf16.mxu0 %v595
        %733 = vmatpush1.bf16.msra.mxu0 %v594
        %734 = vmatprep.subr.bf16.mxu0 %v593
        %735 = vmatpush1.bf16.msra.mxu0 %v592
        %736 = vmatprep.subr.bf16.mxu0 %v623
        %737 = vmatpush2.bf16.msra.mxu0 %v622
        %738 = vmatprep.subr.bf16.mxu0 %v621
        %739 = vmatpush2.bf16.msra.mxu0 %v620
        %740 = vmatprep.subr.bf16.mxu0 %v619
        %741 = vmatpush2.bf16.msra.mxu0 %v618
        %742 = vmatprep.subr.bf16.mxu0 %v617
        %743 = vmatpush2.bf16.msra.mxu0 %v616
        %744 = vmatprep.subr.bf16.mxu0 %v615
        %745 = vmatpush2.bf16.msra.mxu0 %v614
        %746 = vmatprep.subr.bf16.mxu0 %v613
        %747 = vmatpush2.bf16.msra.mxu0 %v612
        %748 = vmatprep.subr.bf16.mxu0 %v611
        %749 = vmatpush2.bf16.msra.mxu0 %v610
        %750 = vmatprep.subr.bf16.mxu0 %v609
        %751 = vmatpush2.bf16.msra.mxu0 %v608
        %752 = vmatprep.mubr.bf16.mxu0 %v393
        %753 = vmatmul.mubr.bf16.gmra.mxu0 %v386
        %v754 = vpop.f32.mrf.mxu0
        %v755 = vadd.f32 %v364, %v754
        %v756 = vpop.f32.mrf.mxu0
        %v757 = vadd.f32 %v368, %v756
        %v758 = vpop.f32.mrf.mxu0
        %v759 = vpop.f32.mrf.mxu0
        %760 = vdwg.mxu0
        %761 = vmatprep.subr.bf16.mxu0 %v639
        %762 = vmatpush1.bf16.msra.mxu0 %v638
        %763 = vmatprep.subr.bf16.mxu0 %v637
        %764 = vmatpush1.bf16.msra.mxu0 %v636
        %765 = vmatprep.subr.bf16.mxu0 %v635
        %766 = vmatpush1.bf16.msra.mxu0 %v634
        %767 = vmatprep.subr.bf16.mxu0 %v633
        %768 = vmatpush1.bf16.msra.mxu0 %v632
        %769 = vmatprep.subr.bf16.mxu0 %v631
        %770 = vmatpush1.bf16.msra.mxu0 %v630
        %771 = vmatprep.subr.bf16.mxu0 %v629
        %772 = vmatpush1.bf16.msra.mxu0 %v628
        %773 = vmatprep.subr.bf16.mxu0 %v627
        %774 = vmatpush1.bf16.msra.mxu0 %v626
        %775 = vmatprep.subr.bf16.mxu0 %v625
        %776 = vmatpush1.bf16.msra.mxu0 %v624
        %777 = vmatprep.subr.bf16.mxu0 %v655
        %778 = vmatpush2.bf16.msra.mxu0 %v654
        %779 = vmatprep.subr.bf16.mxu0 %v653
        %780 = vmatpush2.bf16.msra.mxu0 %v652
        %781 = vmatprep.subr.bf16.mxu0 %v651
        %782 = vmatpush2.bf16.msra.mxu0 %v650
        %783 = vmatprep.subr.bf16.mxu0 %v649
        %784 = vmatpush2.bf16.msra.mxu0 %v648
        %785 = vmatprep.subr.bf16.mxu0 %v647
        %786 = vmatpush2.bf16.msra.mxu0 %v646
        %787 = vmatprep.subr.bf16.mxu0 %v645
        %788 = vmatpush2.bf16.msra.mxu0 %v644
        %789 = vmatprep.subr.bf16.mxu0 %v643
        %790 = vmatpush2.bf16.msra.mxu0 %v642
        %791 = vmatprep.subr.bf16.mxu0 %v641
        %792 = vmatpush2.bf16.msra.mxu0 %v640
        %793 = vmatprep.mubr.bf16.mxu0 %v395
        %794 = vmatmul.mubr.bf16.gmra.mxu0 %v394
        %v795 = vpop.f32.mrf.mxu0
        %v796 = vadd.f32 %v755, %v795
        %v797 = vpop.f32.mrf.mxu0
        %v798 = vadd.f32 %v757, %v797
        %v799 = vpop.f32.mrf.mxu0
        %v800 = vpop.f32.mrf.mxu0
        %801 = vdwg.mxu0
        %803 = vrot.lane.b32.xlu0 %v796, 64
        %v804 = vpop.permute.xlu0 %803
        %807 = vrot.lane.b32.xlu0 %v798, 64
        %v808 = vpop.permute.xlu0 %807
        %v810 = vcombine.low %v796, %v798
        %v812 = vunpack.c.l.s4 1983009808
        %v813 = vunpack.c.0.s8 %v812
        %v814 = vlaneseq
        %v815 = vshrl.u32 %v814, 7
        %v816 = vsub.s32 %v813, %v815
        %v817 = vrot.slane %v810, %v816
        %v818 = vcombine.low %v804, %v808
        %v820 = vunpack.c.l.s4 1983009808
        %v821 = vunpack.c.0.s8 %v820
        %v822 = vlaneseq
        %v823 = vshrl.u32 %v822, 7
        %v824 = vsub.s32 %v821, %v823
        %v825 = vrot.slane %v818, %v824
        %v826 = vcombine.low %v817, %v825
        %v828 = vunpack.c.l.s4 1934713408
        %v829 = vunpack.c.0.s8 %v828
        %v830 = vlaneseq
        %v831 = vshrl.u32 %v830, 7
        %v832 = vsub.s32 %v829, %v831
        %v833 = vrot.slane %v826, %v832
        %v834 = vcombine.high %v833, 0.0
        %vm835 = vcmask 519168
        %v836 = vsel %vm835, %v833, 0.0
        %837 = vadd.xlane.f32.xlu0 %v836
        %v838 = vpop.xlane.xlu0 %837
        %v839 = vsel %vm835, %v834, 0.0
        %840 = vadd.xlane.f32.xlu0 %v839
        %v841 = vpop.xlane.xlu0 %840
        %v842 = vrcp.pop 64.0
        %v843 = vmul.f32 %v838, %v842
        %v844 = vmul.f32 %v841, %v842
        %v845 = vsub.f32 %v833, %v843
        %v846 = vsub.f32 %v834, %v844
        %v847 = vmul.f32 %v845, %v845
        %v848 = vmul.f32 %v846, %v846
        %v849 = vsel %vm835, %v847, 0.0
        %850 = vadd.xlane.f32.xlu0 %v849
        %v851 = vpop.xlane.xlu0 %850
        %v852 = vsel %vm835, %v848, 0.0
        %853 = vadd.xlane.f32.xlu0 %v852
        %v854 = vpop.xlane.xlu0 %853
        %v855 = vmul.f32 %v851, %v842
        %v856 = vmul.f32 %v854, %v842
        %v857 = vadd.f32 %v855, 1e-05
        %v858 = vadd.f32 %v856, 1e-05
        %v859 = vrsqrt.pop %v857
        %v860 = vrsqrt.pop %v858
        %v861 = vmul.f32 %v845, %v859
        %v862 = vmul.f32 %v846, %v860
        %v863 = vld [vmem:[%s3] sm:$0x1]
        %v865 = vlaneseq
        %v866 = vshrl.u32 %v865, 7
        %v867 = vsub.s32 0, %v866
        %v868 = vrot.slane %v863, %v867
        %v870 = vmul.f32 %v861, %v868
        %v871 = vmul.f32 %v862, %v868
        %v872 = vld [vmem:[%s4] sm:$0x1]
        %v874 = vlaneseq
        %v875 = vshrl.u32 %v874, 7
        %v876 = vsub.s32 0, %v875
        %v877 = vrot.slane %v872, %v876
        %v879 = vadd.f32 %v870, %v877
        %v881 = vunpack.c.l.s4 1983009808
        %v882 = vunpack.c.0.s8 %v881
        %v883 = vlaneseq
        %v884 = vshrl.u32 %v883, 7
        %v885 = vsub.s32 %v882, %v884
        %v886 = vrot.slane %v879, %v885
        %v887 = vadd.f32 %v871, %v877
        %v889 = vunpack.c.l.s4 1983009808
        %v890 = vunpack.c.0.s8 %v889
        %v891 = vlaneseq
        %v892 = vshrl.u32 %v891, 7
        %v893 = vsub.s32 %v890, %v892
        %v894 = vrot.slane %v887, %v893
        %v895 = vcombine.low %v886, %v894
        %v896 = vcombine.high %v886, %v894
        %v898 = vunpack.c.l.s4 1934713408
        %v899 = vunpack.c.0.s8 %v898
        %v900 = vlaneseq
        %v901 = vshrl.u32 %v900, 7
        %v902 = vsub.s32 %v899, %v901
        %v903 = vrot.slane %v895, %v902
        %v905 = vunpack.c.l.s4 1934713408
        %v906 = vunpack.c.0.s8 %v905
        %v907 = vlaneseq
        %v908 = vshrl.u32 %v907, 7
        %v909 = vsub.s32 %v906, %v908
        %v910 = vrot.slane %v896, %v909
        %v911 = vcombine.high %v903, 0.0
        %v912 = vcombine.high %v910, 0.0
        %914 = vrot.lane.b32.xlu0 %v911, 64
        %v915 = vpop.permute.xlu0 %914
        %918 = vrot.lane.b32.xlu0 %v912, 64
        %v919 = vpop.permute.xlu0 %918
        %vm921 = vcmask 523264
        %v922 = vsel %vm921, %v903, %v915
        %v923 = vsel %vm921, %v910, %v919
        %v926 = vcombine.low %v922, %v923
        %v928 = vunpack.c.l.s4 1983009808
        %v929 = vunpack.c.0.s8 %v928
        %v930 = vlaneseq
        %v931 = vshrl.u32 %v930, 7
        %v932 = vsub.s32 %v929, %v931
        %v933 = vrot.slane %v926, %v932
        %935 = vst [vmem:[%s290] sm:$0xf] %v933
        %s936 = sand.u32 %s146, 1
        %s937 = scalar_lea.sflag [#allocation4], %s936
        %s938 = sand.u32 %s146, 1
        %s939 = smul.addr %s938, 4
        %s940 = scalar_lea.vmem [#allocation8], %s939
        // Predicated region
        $region53: #{tpu_custom_call.1} parent=39 // pred_check
          %p941 = pneg %p156
        $region54: #{tpu_custom_call.1} parent=39 // pred_check_branch
          %943 = sbr.rel (%p941) target = $region56
        $region55: #{tpu_custom_call.1} parent=39 // pred_region
          %s944 = smul.u32 2, %s23
          %s946 = ssub.s32 64, 64
          %947 = vsyncadd %s937, %s946
          %s948 = smul.addr %s944, 32
          %s949 = scalar_lea.hbm %s5, %s948
          %s951 = sshll.u32 %s940, 4
          %s952 = int_to_ptr.vmem [resolvable:$true] %s951
          %954 = dma.vmem_to_hbm [thread:$0]  %s952, 64, %s949, %s937
        $region56: #{tpu_custom_call.1} parent=39 // pred_fallthru
          _
      $region40: #{tpu_custom_call.1} parent=5 // pred_fallthru
        _
      %p955 = scmp.le.s32.totalorder 2, %s18
      // Predicated region
      $region57: #{tpu_custom_call.1} parent=5 // pred_check
        %p956 = pneg %p955
      $region58: #{tpu_custom_call.1} parent=5 // pred_check_branch
        %958 = sbr.rel (%p956) target = $region60
      $region59: #{tpu_custom_call.1} parent=5 // pred_region
        %s959 = ssub.s32 %s18, 2
        // Predicated region
        $region61: #{tpu_custom_call.1} parent=59 // pred_check
          %p960 = pneg %p162
        $region62: #{tpu_custom_call.1} parent=59 // pred_check_branch
          %962 = sbr.rel (%p960) target = $region64
        $region63: #{tpu_custom_call.1} parent=59 // pred_region
          %s963 = sand.u32 %s147, 1
          %s964 = scalar_lea.sflag [#allocation4], %s963
          %s965 = sand.u32 %s147, 1
          %s966 = smul.addr %s965, 4
          %s967 = scalar_lea.vmem [#allocation8], %s966
          %968 = dma.done %s964, 64
        $region64: #{tpu_custom_call.1} parent=59 // pred_fallthru
          _
      $region60: #{tpu_custom_call.1} parent=5 // pred_fallthru
        _
    $region6: #{tpu_custom_call.1} parent=1 // loop_footer
      %s22 = sadd.s32 1, %s18
    $region7: #{tpu_custom_call.1} parent=1 // loop_footer_branch
      %17 = sbr.rel target = $region3
    $region8: #{tpu_custom_call.1} parent=1 // loop_exit
      _
    %969 = vsyncpa [#allocation3], 1
    %s970 = scalar_lea.sflag [#allocation3], 1
    %971 = vsyncpa %s970, 1
    %972 = vsyncpa [#allocation6], 1
    %s973 = scalar_lea.sflag [#allocation6], 1
    %974 = vsyncpa %s973, 1
    %975 = vsyncpa [#allocation4], 1
    %s976 = scalar_lea.sflag [#allocation4], 1
    %977 = vsyncpa %s976, 1

</llo_original>
